<compile_context>
chip_gen: v7x
topology: tpu7x:2x2x1
jax: 0.10.0
libtpu: 0.0.40
codegen_flags: <defaults>
</compile_context>

<pallas_src>
import jax
import jax.numpy as jnp
import numpy as np
from jax.experimental import pallas as pl
from jax.experimental.pallas import tpu as pltpu


def _phrase_kernel(x_ref, w_ref, b_ref, keep_ref, o_ref):
    TB, L, H = x_ref.shape
    R = TB * L
    x2d = x_ref[...].reshape(R, H)                 # collapse (TB, L) -> rows

    # Single wide MXU matmul: (R, H) @ (H, 6H), f32 accumulation.
    y = jnp.dot(x2d, w_ref[...], preferred_element_type=jnp.float32)

    # Column groups of w_ref (laid out in the wrapper):
    y_c = y[:, 0 * H:2 * H]   # taps applied at t     : [conv1.k0 | conv3.k1]
    y_p = y[:, 2 * H:4 * H]   # taps applied at t - 1 : [conv2.k0 | conv3.k0]
    y_n = y[:, 4 * H:6 * H]   # taps applied at t + 1 : [conv2.k1 | conv3.k2]

    # shift(x) @ W == shift(x @ W) with zero boundary rows -> shift the matmul
    # outputs with an XLU sublane roll.  Rows that would wrap (t == 0 /
    # t == L-1 inside each fused sequence) are zeroed by the precomputed keep
    # masks, which implements both the conv zero padding and the guard against
    # cross-sequence leakage from fusing TB sequences into one roll.
    keep_p = keep_ref[:, 0:1]                      # 0.0 where t == 0     else 1.0
    keep_n = keep_ref[:, 1:2]                      # 0.0 where t == L - 1 else 1.0
    y_p = pltpu.roll(y_p, shift=1, axis=0) * keep_p
    y_n = pltpu.roll(y_n, shift=R - 1, axis=0) * keep_n

    b1 = b_ref[0:1, :]
    b2 = b_ref[1:2, :]
    b3 = b_ref[2:3, :]

    y1 = y_c[:, 0:H] + b1                                          # conv_1 (k=1)
    y2 = y_p[:, 0:H] + y_n[:, 0:H] + b2                            # conv_2 (k=2, dil=2)
    y3 = y_p[:, H:2 * H] + y_c[:, H:2 * H] + y_n[:, H:2 * H] + b3  # conv_3 (k=3)

    out = jnp.maximum(jnp.maximum(y1, y2), y3)
    o_ref[...] = out.reshape(TB, L, H).astype(o_ref.dtype)


def _pick_batch_block(B, L, H, *, target_rows=256, x_vmem_budget=8 << 20):
    """Largest divisor TB of B with TB*L >= target_rows, within a VMEM budget."""
    best = 1
    for tb in range(1, B + 1):
        if B % tb:
            continue
        # double-buffered x block + out block, f32 worst case
        if tb > 1 and 4 * tb * L * H * 4 > x_vmem_budget:
            break
        best = tb
        if tb * L >= target_rows:
            break
    return best


def phrase_level_extractor(x, w1, b1, w2, b2, w3, b3, *,
                           batch_block=None, use_bf16=False):
    """x: (B, L, H).  w_i: torch Conv1d weights (Cout=H, Cin=H, K_i).  b_i: (H,)."""
    B, L, H = x.shape

    # Concatenate all conv taps (each transposed to (Cin, Cout)) into a single
    # (H, 6H) matrix, grouped by which time step they read.
    w_cat = jnp.concatenate([
        w1[:, :, 0].T, w3[:, :, 1].T,     # applied at t
        w2[:, :, 0].T, w3[:, :, 0].T,     # applied at t - 1
        w2[:, :, 1].T, w3[:, :, 2].T,     # applied at t + 1
    ], axis=1)
    b_cat = jnp.stack([b1, b2, b3], axis=0).astype(jnp.float32)   # (3, H)

    if use_bf16:
        # v6e/v7x MXU throughput path: bf16 operands, f32 accumulation + epilogue.
        x_in = x.astype(jnp.bfloat16)
        w_cat = w_cat.astype(jnp.bfloat16)
    else:
        x_in = x

    if batch_block is None:
        batch_block = _pick_batch_block(B, L, H)
    TB = batch_block
    assert B % TB == 0, "batch_block must divide batch size"
    grid = (B // TB,)
    R = TB * L

    # Boundary masks (shared by every grid step): column 0 keeps rows with
    # t != 0, column 1 keeps rows with t != L-1.
    t_idx = jnp.arange(R, dtype=jnp.int32) % L
    keep = jnp.stack([(t_idx != 0), (t_idx != L - 1)], axis=1).astype(jnp.float32)

    x_item = x_in.dtype.itemsize
    out_item = jnp.dtype(x.dtype).itemsize
    flops = 2 * B * L * H * (6 * H)
    bytes_accessed = (x_in.size * x_item
                      + w_cat.size * w_cat.dtype.itemsize
                      + b_cat.size * 4 + keep.size * 4
                      + B * L * H * out_item)

    # Explicit VMEM budget: double-buffered x/out blocks + single-buffered
    # weights / biases / masks (plus slack).
    blk = TB * L * H
    vmem_need = (2 * blk * x_item + 2 * blk * out_item
                 + w_cat.size * w_cat.dtype.itemsize
                 + b_cat.size * 4 + keep.size * 4)
    vmem_limit = int(min(max(2 * vmem_need, 32 << 20), 100 << 20))

    const_buf = pl.Buffered(1)   # grid-invariant operands: no double buffering

    return pl.pallas_call(
        _phrase_kernel,
        out_shape=jax.ShapeDtypeStruct((B, L, H), x.dtype),
        grid_spec=pltpu.PrefetchScalarGridSpec(
            num_scalar_prefetch=0,
            grid=grid,
            in_specs=[
                pl.BlockSpec((TB, L, H), lambda b: (b, 0, 0)),         # x
                pl.BlockSpec((H, 6 * H), lambda b: (0, 0),
                             pipeline_mode=const_buf),                 # w_cat
                pl.BlockSpec((3, H), lambda b: (0, 0),
                             pipeline_mode=const_buf),                 # b_cat
                pl.BlockSpec((R, 2), lambda b: (0, 0),
                             pipeline_mode=const_buf),                 # keep masks
            ],
            out_specs=pl.BlockSpec((TB, L, H), lambda b: (b, 0, 0)),
        ),
        compiler_params=pltpu.CompilerParams(
            dimension_semantics=("parallel",),        # shards batch across TCs on v7x
            vmem_limit_bytes=vmem_limit),
        cost_estimate=pl.CostEstimate(
            flops=int(flops), transcendentals=0,
            bytes_accessed=int(bytes_accessed)),
    )(x_in, w_cat, b_cat, keep)


def _conv1d_ref(x_bhl, w, b, padding, dilation):
    """Pure-JAX reference matching torch.nn.Conv1d semantics (NCL layout)."""
    y = jax.lax.conv_general_dilated(
        x_bhl, w, window_strides=(1,), padding=[(padding, padding)],
        rhs_dilation=(dilation,), dimension_numbers=("NCH", "OIH", "NCH"))
    return y + b[None, :, None]


def _reference(x_blh, w1, b1, w2, b2, w3, b3):
    x_bhl = jnp.transpose(x_blh, (0, 2, 1))       # == torch permute(0, 2, 1)
    y1 = _conv1d_ref(x_bhl, w1, b1, padding=0, dilation=1)
    y2 = _conv1d_ref(x_bhl, w2, b2, padding=1, dilation=2)
    y3 = _conv1d_ref(x_bhl, w3, b3, padding=1, dilation=1)
    y = jnp.maximum(jnp.maximum(y1, y2), y3)
    return jnp.transpose(y, (0, 2, 1))            # back to (B, L, H)


if __name__ == "__main__":
    B, L, H = 2, 8, 32
    key = jax.random.PRNGKey(0)
    kx, k1w, k1b, k2w, k2b, k3w, k3b = jax.random.split(key, 7)

    x = jax.random.normal(kx, (B, L, H), dtype=jnp.float32)
    # Deterministic synthetic Conv1d parameters (torch weight layout: Cout, Cin, K).
    w1 = 0.1 * jax.random.normal(k1w, (H, H, 1), dtype=jnp.float32)
    b1 = 0.1 * jax.random.normal(k1b, (H,), dtype=jnp.float32)
    w2 = 0.1 * jax.random.normal(k2w, (H, H, 2), dtype=jnp.float32)
    b2 = 0.1 * jax.random.normal(k2b, (H,), dtype=jnp.float32)
    w3 = 0.1 * jax.random.normal(k3w, (H, H, 3), dtype=jnp.float32)
    b3 = 0.1 * jax.random.normal(k3b, (H,), dtype=jnp.float32)

    ref = jax.block_until_ready(_reference(x, w1, b1, w2, b2, w3, b3))

    # f32 path — matches torch numerics.
    out = jax.block_until_ready(phrase_level_extractor(x, w1, b1, w2, b2, w3, b3))
    np.testing.assert_allclose(np.asarray(out), np.asarray(ref), rtol=1e-5, atol=1e-5)

    # Optional bf16 MXU path (f32 accumulation) — looser tolerance vs f32 reference.
    out_bf16 = jax.block_until_ready(
        phrase_level_extractor(x, w1, b1, w2, b2, w3, b3, use_bf16=True))
    np.testing.assert_allclose(np.asarray(out_bf16), np.asarray(ref),
                               rtol=5e-2, atol=5e-2)

    print("KERNEL_OK")
</pallas_src>

<mosaic_0001>
module attributes {stable_mosaic.version = 11 : i64} {
  func.func @_phrase_kernel(%arg0: i32, %arg1: memref<2x8x32xf32, #tpu.memory_space<vmem>>, %arg2: memref<32x192xf32, #tpu.memory_space<vmem>>, %arg3: memref<3x32xf32, #tpu.memory_space<vmem>>, %arg4: memref<16x2xf32, #tpu.memory_space<vmem>>, %arg5: memref<2x8x32xf32, #tpu.memory_space<vmem>>) attributes {dimension_semantics = [#tpu.dimension_semantics<parallel>], iteration_bounds = array<i64: 1>, scalar_prefetch = 0 : i64, scratch_operands = 0 : i64, tpu.core_type = #tpu.core_type<tc>, window_params = [{transform_indices = @transform_0, window_bounds = array<i64: 2, 8, 32>}, {pipeline_mode = #tpu.pipeline_mode<synchronous>, transform_indices = @transform_1, window_bounds = array<i64: 32, 192>}, {pipeline_mode = #tpu.pipeline_mode<synchronous>, transform_indices = @transform_2, window_bounds = array<i64: 3, 32>}, {pipeline_mode = #tpu.pipeline_mode<synchronous>, transform_indices = @transform_3, window_bounds = array<i64: 16, 2>}, {transform_indices = @transform_4, window_bounds = array<i64: 2, 8, 32>}]} {
    %c0 = arith.constant 0 : index
    %c0_0 = arith.constant 0 : index
    %c0_1 = arith.constant 0 : index
    %0 = vector.load %arg1[%c0, %c0_0, %c0_1] : memref<2x8x32xf32, #tpu.memory_space<vmem>>, vector<2x8x32xf32>
    %1 = vector.shape_cast %0 : vector<2x8x32xf32> to vector<16x32xf32>
    %c0_2 = arith.constant 0 : index
    %c0_3 = arith.constant 0 : index
    %2 = vector.load %arg2[%c0_2, %c0_3] : memref<32x192xf32, #tpu.memory_space<vmem>>, vector<32x192xf32>
    %cst = arith.constant dense<0.000000e+00> : vector<16x192xf32>
    %3 = tpu.matmul %1, %2, %cst {dimension_numbers = #tpu.dot_dimension_numbers<[1], [0], [0], [1], [0, 0, 1, 1], [], []>} : vector<16x32xf32>, vector<32x192xf32>, vector<16x192xf32> -> vector<16x192xf32>
    %4 = vector.extract_strided_slice %3 {offsets = [0, 0], sizes = [16, 64], strides = [1, 1]} : vector<16x192xf32> to vector<16x64xf32>
    %5 = vector.extract_strided_slice %3 {offsets = [0, 64], sizes = [16, 64], strides = [1, 1]} : vector<16x192xf32> to vector<16x64xf32>
    %6 = vector.extract_strided_slice %3 {offsets = [0, 128], sizes = [16, 64], strides = [1, 1]} : vector<16x192xf32> to vector<16x64xf32>
    %c0_4 = arith.constant 0 : index
    %c0_5 = arith.constant 0 : index
    %7 = vector.load %arg4[%c0_4, %c0_5] : memref<16x2xf32, #tpu.memory_space<vmem>>, vector<16x1xf32>
    %c0_6 = arith.constant 0 : index
    %c1 = arith.constant 1 : index
    %8 = vector.load %arg4[%c0_6, %c1] : memref<16x2xf32, #tpu.memory_space<vmem>>, vector<16x1xf32>
    %c1_i32 = arith.constant 1 : i32
    %9 = tpu.dynamic_rotate %5 by %c1_i32 dim 0 : vector<16x64xf32>, i32 -> vector<16x64xf32>
    %10 = vector.broadcast %7 : vector<16x1xf32> to vector<16x64xf32>
    %11 = arith.mulf %9, %10 : vector<16x64xf32>
    %c15_i32 = arith.constant 15 : i32
    %12 = tpu.dynamic_rotate %6 by %c15_i32 dim 0 : vector<16x64xf32>, i32 -> vector<16x64xf32>
    %13 = vector.broadcast %8 : vector<16x1xf32> to vector<16x64xf32>
    %14 = arith.mulf %12, %13 : vector<16x64xf32>
    %c0_7 = arith.constant 0 : index
    %c0_8 = arith.constant 0 : index
    %15 = vector.load %arg3[%c0_7, %c0_8] : memref<3x32xf32, #tpu.memory_space<vmem>>, vector<1x32xf32>
    %c1_9 = arith.constant 1 : index
    %c0_10 = arith.constant 0 : index
    %16 = vector.load %arg3[%c1_9, %c0_10] : memref<3x32xf32, #tpu.memory_space<vmem>>, vector<1x32xf32>
    %c2 = arith.constant 2 : index
    %c0_11 = arith.constant 0 : index
    %17 = vector.load %arg3[%c2, %c0_11] : memref<3x32xf32, #tpu.memory_space<vmem>>, vector<1x32xf32>
    %18 = vector.extract_strided_slice %4 {offsets = [0, 0], sizes = [16, 32], strides = [1, 1]} : vector<16x64xf32> to vector<16x32xf32>
    %19 = vector.broadcast %15 : vector<1x32xf32> to vector<16x32xf32>
    %20 = arith.addf %18, %19 : vector<16x32xf32>
    %21 = vector.extract_strided_slice %11 {offsets = [0, 0], sizes = [16, 32], strides = [1, 1]} : vector<16x64xf32> to vector<16x32xf32>
    %22 = vector.extract_strided_slice %14 {offsets = [0, 0], sizes = [16, 32], strides = [1, 1]} : vector<16x64xf32> to vector<16x32xf32>
    %23 = arith.addf %21, %22 : vector<16x32xf32>
    %24 = vector.broadcast %16 : vector<1x32xf32> to vector<16x32xf32>
    %25 = arith.addf %23, %24 : vector<16x32xf32>
    %26 = vector.extract_strided_slice %11 {offsets = [0, 32], sizes = [16, 32], strides = [1, 1]} : vector<16x64xf32> to vector<16x32xf32>
    %27 = vector.extract_strided_slice %4 {offsets = [0, 32], sizes = [16, 32], strides = [1, 1]} : vector<16x64xf32> to vector<16x32xf32>
    %28 = arith.addf %26, %27 : vector<16x32xf32>
    %29 = vector.extract_strided_slice %14 {offsets = [0, 32], sizes = [16, 32], strides = [1, 1]} : vector<16x64xf32> to vector<16x32xf32>
    %30 = arith.addf %28, %29 : vector<16x32xf32>
    %31 = vector.broadcast %17 : vector<1x32xf32> to vector<16x32xf32>
    %32 = arith.addf %30, %31 : vector<16x32xf32>
    %33 = arith.maximumf %20, %25 : vector<16x32xf32>
    %34 = arith.maximumf %33, %32 : vector<16x32xf32>
    %35 = vector.shape_cast %34 : vector<16x32xf32> to vector<2x8x32xf32>
    %c0_12 = arith.constant 0 : index
    %c0_13 = arith.constant 0 : index
    %c0_14 = arith.constant 0 : index
    %36 = vector.load %arg5[%c0_12, %c0_13, %c0_14] : memref<2x8x32xf32, #tpu.memory_space<vmem>>, vector<2x8x32xf32>
    tpu.vector_store %arg5[%c0_12, %c0_13, %c0_14], %35 {strides = array<i32>} : memref<2x8x32xf32, #tpu.memory_space<vmem>>, vector<2x8x32xf32>,
    return
  }
  func.func @transform_0(%arg0: i32) -> (i32, i32, i32) {
    %c0_i32 = arith.constant 0 : i32
    %c0_i32_0 = arith.constant 0 : i32
    %c0_i32_1 = arith.constant 0 : i32
    return %arg0, %c0_i32, %c0_i32_0 : i32, i32, i32
  }
  func.func @transform_1(%arg0: i32) -> (i32, i32) {
    %c0_i32 = arith.constant 0 : i32
    %c0_i32_0 = arith.constant 0 : i32
    %c0_i32_1 = arith.constant 0 : i32
    return %c0_i32, %c0_i32_0 : i32, i32
  }
  func.func @transform_2(%arg0: i32) -> (i32, i32) {
    %c0_i32 = arith.constant 0 : i32
    %c0_i32_0 = arith.constant 0 : i32
    %c0_i32_1 = arith.constant 0 : i32
    return %c0_i32, %c0_i32_0 : i32, i32
  }
  func.func @transform_3(%arg0: i32) -> (i32, i32) {
    %c0_i32 = arith.constant 0 : i32
    %c0_i32_0 = arith.constant 0 : i32
    %c0_i32_1 = arith.constant 0 : i32
    return %c0_i32, %c0_i32_0 : i32, i32
  }
  func.func @transform_4(%arg0: i32) -> (i32, i32, i32) {
    %c0_i32 = arith.constant 0 : i32
    %c0_i32_0 = arith.constant 0 : i32
    %c0_i32_1 = arith.constant 0 : i32
    return %arg0, %c0_i32, %c0_i32_0 : i32, i32, i32
  }
}

</mosaic_0001>

<llo_original>
// kernel: tpu_custom_call.1
$region0: #{tpu_custom_call.1}
  #allocation0 [shape = 'u32[]', space=smem, size = 0x4, offset = 0x4, fixed_abs, tag = 'smem constant byte address 0x4 - core index']
  #allocation1 [shape = 'u32[144,128]{1,0:T(1,128)}', space=vmem, size = 0x12000, scoped, tag = 'internal scratch']
  %s0 = inlined_call_operand.vmem [shape: f32[2,8,32], index: 0, kind: input, shape index: {}]
  %s1 = inlined_call_operand.hbm [shape: f32[32,192], index: 1, kind: input, shape index: {}]
  %s2 = inlined_call_operand.vmem [shape: f32[3,32], index: 2, kind: input, shape index: {}]
  %s3 = inlined_call_operand.vmem [shape: f32[16,2], index: 3, kind: input, shape index: {}]
  %s4 = inlined_call_operand.hbm [shape: f32[2,8,32], index: 4, kind: output, shape index: {}]
  %s5 = sld [smem:[#allocation0]]
  $region30: #{tpu_custom_call.1} parent=0
    _
  %s7 = ssub.s32 1, %s5
  %s8 = scalar_select 0, %s7, %s5
  $region1: #{tpu_custom_call.1} parent=0
    #allocation2 [shape = 'u8[32768]{0}', space=vmem, size = 0x8000, scoped, tag = 'input window, operand 1, single buffered']
    #allocation3 [shape = 's32[1]{0}', space=sflag, size = 0x4, scoped, tag = 'scoped memory for tpu_custom_call.1']
    #allocation4 [shape = 's32[1]{0}', space=sflag, size = 0x4, scoped, tag = 'scoped memory for tpu_custom_call.1']
    #allocation5 [shape = 'u8[8192]{0}', space=vmem, size = 0x2000, scoped, tag = 'output window, operand 0, single buffered']
    %9 = vsyncpa [#allocation3], 0
    %10 = vsyncpa [#allocation4], 0
    // Predicated region
    $region2: #{tpu_custom_call.1} parent=1 // pred_check
      _
    $region3: #{tpu_custom_call.1} parent=1 // pred_check_branch
      %12 = sbr.rel (0) target = $region5
    $region4: #{tpu_custom_call.1} parent=1 // pred_region
      _
    $region5: #{tpu_custom_call.1} parent=1 // pred_fallthru
      _
    // Predicated region
    $region6: #{tpu_custom_call.1} parent=1 // pred_check
      _
    $region7: #{tpu_custom_call.1} parent=1 // pred_check_branch
      %14 = sbr.rel (0) target = $region9
    $region8: #{tpu_custom_call.1} parent=1 // pred_region
      %s16 = ssub.s32 1024, 1024
      %17 = vsyncadd [#allocation3], %s16
      %s18 = sshll.u32 [#allocation2], 4
      %s19 = int_to_ptr.vmem [resolvable:$true] %s18
      %24 = dma.hbm_to_vmem [thread:$0]  %s1, 1024, %s19, [#allocation3], 256, 256, 16
    $region9: #{tpu_custom_call.1} parent=1 // pred_fallthru
      _
    // Predicated region
    $region10: #{tpu_custom_call.1} parent=1 // pred_check
      _
    $region11: #{tpu_custom_call.1} parent=1 // pred_check_branch
      %26 = sbr.rel (0) target = $region13
    $region12: #{tpu_custom_call.1} parent=1 // pred_region
      _
    $region13: #{tpu_custom_call.1} parent=1 // pred_fallthru
      _
    // Predicated region
    $region14: #{tpu_custom_call.1} parent=1 // pred_check
      _
    $region15: #{tpu_custom_call.1} parent=1 // pred_check_branch
      %28 = sbr.rel (0) target = $region17
    $region16: #{tpu_custom_call.1} parent=1 // pred_region
      _
    $region17: #{tpu_custom_call.1} parent=1 // pred_fallthru
      _
    // Predicated region
    $region18: #{tpu_custom_call.1} parent=1 // pred_check
      _
    $region19: #{tpu_custom_call.1} parent=1 // pred_check_branch
      %30 = sbr.rel (0) target = $region21
    $region20: #{tpu_custom_call.1} parent=1 // pred_region
      %31 = dma.done [#allocation3], 1024
    $region21: #{tpu_custom_call.1} parent=1 // pred_fallthru
      _
    %v32 = vld [vmem:[%s0] sm:$0xff]
    %v33 = vld [vmem:[%s0 + $0x8] sm:$0xff]
    %v34 = vld [vmem:[#allocation2] sm:$0xff]
    %v35 = vld [vmem:[#allocation2 + $0x8] sm:$0xff]
    %v36 = vld [vmem:[#allocation2 + $0x10] sm:$0xff]
    %v37 = vld [vmem:[#allocation2 + $0x18] sm:$0xff]
    %v38 = vld [vmem:[#allocation2 + $0x20] sm:$0xff]
    %v39 = vld [vmem:[#allocation2 + $0x28] sm:$0xff]
    %v40 = vld [vmem:[#allocation2 + $0x30] sm:$0xff]
    %v41 = vld [vmem:[#allocation2 + $0x38] sm:$0xff]
    %vm42 = vcmask 261120
    %v44 = vsel %vm42, %v32, 0
    %v47 = vsel %vm42, %v33, 0
    %49 = vmatprep.subr.mxu0 %v35
    %50 = vmatpush1.msra.mxu0 %v34
    %51 = vmatprep.subr.mxu0 %v37
    %52 = vmatpush1.msra.mxu0 %v36
    %53 = vmatprep.subr.mxu0 %v39
    %54 = vmatpush1.msra.mxu0 %v38
    %55 = vmatprep.subr.mxu0 %v41
    %56 = vmatpush1.msra.mxu0 %v40
    %57 = vmatprep.subr.mxu0 0.0
    %58 = vmatpush1.msra.mxu0 0.0
    %59 = vmatprep.subr.mxu0 0.0
    %60 = vmatpush1.msra.mxu0 0.0
    %61 = vmatprep.subr.mxu0 0.0
    %62 = vmatpush1.msra.mxu0 0.0
    %63 = vmatprep.subr.mxu0 0.0
    %64 = vmatpush1.msra.mxu0 0.0
    %65 = vmatprep.subr.mxu0 0.0
    %66 = vmatpush1.msra.mxu0 0.0
    %67 = vmatprep.subr.mxu0 0.0
    %68 = vmatpush1.msra.mxu0 0.0
    %69 = vmatprep.subr.mxu0 0.0
    %70 = vmatpush1.msra.mxu0 0.0
    %71 = vmatprep.subr.mxu0 0.0
    %72 = vmatpush1.msra.mxu0 0.0
    %73 = vmatprep.subr.mxu0 0.0
    %74 = vmatpush1.msra.mxu0 0.0
    %75 = vmatprep.subr.mxu0 0.0
    %76 = vmatpush1.msra.mxu0 0.0
    %77 = vmatprep.subr.mxu0 0.0
    %78 = vmatpush1.msra.mxu0 0.0
    %79 = vmatprep.subr.mxu0 0.0
    %80 = vmatpush1.msra.mxu0 0.0
    %81 = vmatprep.subr.mxu0 0.0
    %82 = vmatpush1.msra.mxu0 0.0
    %83 = vmatprep.subr.mxu0 0.0
    %84 = vmatpush1.msra.mxu0 0.0
    %85 = vmatprep.subr.mxu0 0.0
    %86 = vmatpush1.msra.mxu0 0.0
    %87 = vmatprep.subr.mxu0 0.0
    %88 = vmatpush1.msra.mxu0 0.0
    %89 = vmatprep.subr.mxu0 0.0
    %90 = vmatpush1.msra.mxu0 0.0
    %91 = vmatprep.subr.mxu0 0.0
    %92 = vmatpush1.msra.mxu0 0.0
    %93 = vmatprep.subr.mxu0 0.0
    %94 = vmatpush1.msra.mxu0 0.0
    %95 = vmatprep.subr.mxu0 0.0
    %96 = vmatpush1.msra.mxu0 0.0
    %97 = vmatprep.subr.mxu0 0.0
    %98 = vmatpush1.msra.mxu0 0.0
    %99 = vmatprep.subr.mxu0 0.0
    %100 = vmatpush1.msra.mxu0 0.0
    %101 = vmatprep.subr.mxu0 0.0
    %102 = vmatpush1.msra.mxu0 0.0
    %103 = vmatprep.subr.mxu0 0.0
    %104 = vmatpush1.msra.mxu0 0.0
    %105 = vmatprep.subr.mxu0 0.0
    %106 = vmatpush1.msra.mxu0 0.0
    %107 = vmatprep.subr.mxu0 0.0
    %108 = vmatpush1.msra.mxu0 0.0
    %109 = vmatprep.subr.mxu0 0.0
    %110 = vmatpush1.msra.mxu0 0.0
    %111 = vmatprep.subr.mxu0 0.0
    %112 = vmatpush1.msra.mxu0 0.0
    %113 = vmatprep.mubr.f32.mxu0 0.0
    %114 = vmatmul.mubr.f32.gmra.mrb[0].mxu0 %v44
    %v115 = vpop.f32.mrb[0].mxu0
    %v116 = vadd.f32 0.0, %v115
    %v117 = vpop.f32.mrb[0].mxu0
    %v118 = vadd.f32 0.0, %v117
    %119 = vmatprep.mubr.f32.mxu0 0.0
    %120 = vmatmul.mubr.f32.gmra.mrb[0].mxu0 %v47
    %v121 = vpop.f32.mrb[0].mxu0
    %v122 = vadd.f32 0.0, %v121
    %v123 = vpop.f32.mrb[0].mxu0
    %v124 = vadd.f32 0.0, %v123
    %125 = vdwg.mxu0
    %v126 = vld [vmem:[%s3] sm:$0xff]
    %v127 = vld [vmem:[%s3 + $0x8] sm:$0xff]
    %130 = vrot.lane.b32.xlu0 %v116, 64
    %v131 = vpop.permute.xlu0 %130
    %132 = vrot.lane.b32.xlu0 %v122, 64
    %v133 = vpop.permute.xlu0 %132
    %v136 = vrot.slane %v131, 7
    %v137 = vrot.slane %v133, 7
    %v138 = vlaneseq
    %v139 = vshrl.u32 %v138, 7
    %vm140 = vcmp.lt.s32.totalorder %v139, 1
    %v141 = vsel %vm140, %v136, %v137
    %v142 = vsel %vm140, %v137, %v136
    %144 = vset.pattern.permute.xlu0 0
    %145 = vperm.xlu0 %144, %v126
    %v146 = vpop.permute.xlu0 %145
    %149 = vset.pattern.permute.xlu0 0
    %150 = vperm.xlu0 %149, %v127
    %v151 = vpop.permute.xlu0 %150
    %v153 = vmul.f32 %v142, %v146
    %v154 = vmul.f32 %v141, %v151
    %v155 = vrot.slane %v118, 1
    %v156 = vrot.slane %v124, 1
    %vm157 = vcmp.lt.s32.totalorder %v139, 7
    %v158 = vsel %vm157, %v155, %v156
    %v159 = vsel %vm157, %v156, %v155
    %160 = vset.pattern.permute.xlu0 1
    %161 = vperm.xlu0 %160, %v126
    %v162 = vpop.permute.xlu0 %161
    %164 = vset.pattern.permute.xlu0 1
    %165 = vperm.xlu0 %164, %v127
    %v166 = vpop.permute.xlu0 %165
    %v168 = vmul.f32 %v158, %v162
    %v169 = vmul.f32 %v159, %v166
    %v170 = vld [vmem:[%s2] sm:$0x1]
    %v171 = vld [vmem:[%s2 + $0x1] sm:$0x1]
    %v172 = vld [vmem:[%s2 + $0x2] sm:$0x1]
    %v173 = vlaneseq
    %v174 = vshrl.u32 %v173, 7
    %v175 = vsub.s32 0, %v174
    %v176 = vrot.slane %v170, %v175
    %v177 = vadd.f32 %v116, %v176
    %v178 = vadd.f32 %v122, %v176
    %v179 = vadd.f32 %v153, %v168
    %v180 = vadd.f32 %v154, %v169
    %v181 = vlaneseq
    %v182 = vshrl.u32 %v181, 7
    %v183 = vsub.s32 0, %v182
    %v184 = vrot.slane %v171, %v183
    %v185 = vadd.f32 %v179, %v184
    %v186 = vadd.f32 %v180, %v184
    %v187 = vadd.f32 %v153, %v116
    %v188 = vadd.f32 %v154, %v122
    %v189 = vadd.f32 %v187, %v168
    %v190 = vadd.f32 %v188, %v169
    %v191 = vlaneseq
    %v192 = vshrl.u32 %v191, 7
    %v193 = vsub.s32 0, %v192
    %v194 = vrot.slane %v172, %v193
    %196 = vrot.lane.b32.xlu0 %v194, 32
    %v197 = vpop.permute.xlu0 %196
    %v199 = vadd.f32 %v189, %v197
    %v200 = vadd.f32 %v190, %v197
    %v201 = vmax.f32 %v177, %v185
    %v202 = vmax.f32 %v178, %v186
    %205 = vrot.lane.b32.xlu0 %v199, 96
    %v206 = vpop.permute.xlu0 %205
    %207 = vrot.lane.b32.xlu0 %v200, 96
    %v208 = vpop.permute.xlu0 %207
    %v211 = vmax.f32 %v201, %v206
    %v212 = vmax.f32 %v202, %v208
    %213 = vst.msk [vmem:[#allocation5] sm:$0xff] %vm42, %v211
    %214 = vst.msk [vmem:[#allocation5 + $0x8] sm:$0xff] %vm42, %v212
    // Predicated region
    $region22: #{tpu_custom_call.1} parent=1 // pred_check
      _
    $region23: #{tpu_custom_call.1} parent=1 // pred_check_branch
      %216 = sbr.rel (0) target = $region25
    $region24: #{tpu_custom_call.1} parent=1 // pred_region
      %s218 = ssub.s32 256, 256
      %219 = vsyncadd [#allocation4], %s218
      %s220 = sshll.u32 [#allocation5], 4
      %s221 = int_to_ptr.vmem [resolvable:$true] %s220
      %226 = dma.vmem_to_hbm [thread:$0]  %s221, 256, %s4, [#allocation4], 128, 128, 8
    $region25: #{tpu_custom_call.1} parent=1 // pred_fallthru
      _
    // Predicated region
    $region26: #{tpu_custom_call.1} parent=1 // pred_check
      _
    $region27: #{tpu_custom_call.1} parent=1 // pred_check_branch
      %228 = sbr.rel (0) target = $region29
    $region28: #{tpu_custom_call.1} parent=1 // pred_region
      %229 = dma.done [#allocation4], 256
    $region29: #{tpu_custom_call.1} parent=1 // pred_fallthru
      _
    %230 = vsyncpa [#allocation3], 1
    %231 = vsyncpa [#allocation4], 1

</llo_original>
